<compile_context>
chip_gen: v7x
topology: tpu7x:2x2x1
jax: 0.10.0
libtpu: 0.0.40
codegen_flags: <defaults>
</compile_context>

<pallas_src>
import math

import jax
import jax.numpy as jnp
from jax import lax
from jax.experimental import pallas as pl
from jax.experimental.pallas import tpu as pltpu

_NEG_INF = -1e30  # finite "-inf": fully-masked rows -> uniform attention, not NaN


# ---------------------------------------------------------------------------
# Small helpers
# ---------------------------------------------------------------------------
def _round_up(x, m):
    return ((x + m - 1) // m) * m


def _pad2(x, rows, cols):
    r, c = x.shape
    if r == rows and c == cols:
        return x
    return jnp.pad(x, ((0, rows - r), (0, cols - c)))


def _pick_tile(dim, prefs):
    for p in prefs:
        if p <= dim and dim % p == 0:
            return p
    return dim


def _row_tile(n):
    for cand in (512, 256, 128):
        if n >= cand and n % cand == 0:
            return cand, n
    if n <= 512:
        t = _round_up(n, 8)
        return t, t
    return 256, _round_up(n, 256)


def _tpu_geometry():
    """(vmem_limit_bytes, q_tile_pref) - generation aware, with safe fallbacks."""
    vmem_limit = 48 * 1024 * 1024
    tq_pref = 256
    try:
        info = pltpu.get_tpu_info()
        cap = getattr(info, "vmem_capacity_bytes", None)
        if cap:
            vmem_limit = int(min(cap * 3 // 4, 96 * 1024 * 1024))
        version = str(getattr(info, "chip_version", "")).lower()
        if "v5e" in version or "v5lite" in version or "v5 lite" in version:
            tq_pref = 128  # 4x128x128 MXU: 256-wide tiles buy nothing on v5e
    except Exception:
        pass
    return vmem_limit, tq_pref


# ---------------------------------------------------------------------------
# Kernel 1a: fused Q/K/V projection, general path (three activation streams)
#   xq/xk/xv: [Np, Ep] bf16, wq/wk/wv: [Ep, HDp] bf16, b3: [3, HDp] f32
#   out:      [3, Np, HDp] bf16   (accumulated in f32 VMEM scratch)
# ---------------------------------------------------------------------------
def _qkv_proj3_kernel(xq_ref, xk_ref, xv_ref, wq_ref, wk_ref, wv_ref, b_ref,
                      o_ref, accq, acck, accv):
    @pl.when(pl.program_id(2) == 0)
    def _init():
        accq[...] = jnp.zeros_like(accq)
        acck[...] = jnp.zeros_like(acck)
        accv[...] = jnp.zeros_like(accv)

    accq[...] += jnp.dot(xq_ref[...], wq_ref[...], preferred_element_type=jnp.float32)
    acck[...] += jnp.dot(xk_ref[...], wk_ref[...], preferred_element_type=jnp.float32)
    accv[...] += jnp.dot(xv_ref[...], wv_ref[...], preferred_element_type=jnp.float32)

    @pl.when(pl.program_id(2) == pl.num_programs(2) - 1)
    def _finalize():
        o_ref[0] = (accq[...] + b_ref[0:1, :]).astype(o_ref.dtype)
        o_ref[1] = (acck[...] + b_ref[1:2, :]).astype(o_ref.dtype)
        o_ref[2] = (accv[...] + b_ref[2:3, :]).astype(o_ref.dtype)


def _fused_qkv_projection_general(xq, xk, xv, wq, wk, wv, b3, vmem_limit):
    N, E = xq.shape
    HD = wq.shape[1]
    HDp = _round_up(HD, 128)
    Ep = _round_up(E, 128)
    tm, Np = _row_tile(N)
    tn = _pick_tile(HDp, (256, 128))
    tk = _pick_tile(Ep, (1024, 512, 256, 128))

    pad_x = lambda a: _pad2(a, Np, Ep)
    pad_w = lambda a: _pad2(a, Ep, HDp)
    xq, xk, xv = pad_x(xq), pad_x(xk), pad_x(xv)
    wq, wk, wv = pad_w(wq), pad_w(wk), pad_w(wv)
    b3 = _pad2(b3, 3, HDp)

    x_spec = pl.BlockSpec((tm, tk), lambda i, j, k: (i, k))
    w_spec = pl.BlockSpec((tk, tn), lambda i, j, k: (k, j))
    b_spec = pl.BlockSpec((3, tn), lambda i, j, k: (0, j))
    o_spec = pl.BlockSpec((3, tm, tn), lambda i, j, k: (0, i, j))

    return pl.pallas_call(
        _qkv_proj3_kernel,
        grid=(Np // tm, HDp // tn, Ep // tk),
        in_specs=[x_spec, x_spec, x_spec, w_spec, w_spec, w_spec, b_spec],
        out_specs=o_spec,
        out_shape=jax.ShapeDtypeStruct((3, Np, HDp), jnp.bfloat16),
        scratch_shapes=[pltpu.VMEM((tm, tn), jnp.float32)] * 3,
        compiler_params=pltpu.CompilerParams(
            dimension_semantics=("parallel", "parallel", "arbitrary"),
            vmem_limit_bytes=vmem_limit),
    )(xq, xk, xv, wq, wk, wv, b3)


# ---------------------------------------------------------------------------
# Kernel 1b: self-attention fast path (one activation stream, fused weights)
#   x: [Np, Ep] bf16, w3: [Ep, 3*HDp] bf16, b3: [1, 3*HDp] f32
#   out: [3, Np, HDp] bf16
# ---------------------------------------------------------------------------
def _qkv_proj1_kernel(x_ref, w_ref, b_ref, o_ref, acc_ref):
    @pl.when(pl.program_id(2) == 0)
    def _init():
        acc_ref[...] = jnp.zeros_like(acc_ref)

    acc_ref[...] += jnp.dot(x_ref[...], w_ref[...], preferred_element_type=jnp.float32)

    @pl.when(pl.program_id(2) == pl.num_programs(2) - 1)
    def _finalize():
        o_ref[...] = (acc_ref[...] + b_ref[...]).astype(o_ref.dtype)


def _fused_qkv_projection_self(x, w3, b3, HDp, vmem_limit):
    N, E = x.shape
    Ep = _round_up(E, 128)
    tm, Np = _row_tile(N)
    tn = _pick_tile(HDp, (256, 128))
    tk = _pick_tile(Ep, (1024, 512, 256, 128))
    KH = HDp // tn  # column blocks per projection section

    x = _pad2(x, Np, Ep)
    w3 = _pad2(w3, Ep, 3 * HDp)

    x_spec = pl.BlockSpec((tm, tk), lambda i, j, k: (i, k))
    w_spec = pl.BlockSpec((tk, tn), lambda i, j, k: (k, j))
    b_spec = pl.BlockSpec((1, tn), lambda i, j, k: (0, j))
    o_spec = pl.BlockSpec((None, tm, tn), lambda i, j, k: (j // KH, i, j % KH))

    return pl.pallas_call(
        _qkv_proj1_kernel,
        grid=(Np // tm, (3 * HDp) // tn, Ep // tk),
        in_specs=[x_spec, w_spec, b_spec],
        out_specs=o_spec,
        out_shape=jax.ShapeDtypeStruct((3, Np, HDp), jnp.bfloat16),
        scratch_shapes=[pltpu.VMEM((tm, tn), jnp.float32)],
        compiler_params=pltpu.CompilerParams(
            dimension_semantics=("parallel", "parallel", "arbitrary"),
            vmem_limit_bytes=vmem_limit),
    )(x, w3, b3)


# ---------------------------------------------------------------------------
# Kernel 2: KV-tiled online-softmax attention
#   qkv: [3, B, Sp, HDp] bf16 (q already pre-scaled by 1/sqrt(D))
#   mask: optional [B, Sp, Sp] int8 (nonzero = attend)
#   out: [Sp, B*HDp] f32  (free reshape to [Sp, B, HDp])
#   grid = (B, Sp//tq, head_groups, Sp//tkv), KV innermost / "arbitrary"
# ---------------------------------------------------------------------------
def _make_attention_kernel(*, gh, head_dim, seq_len, tkv, seq_padded, use_mask):
    D = head_dim

    def kernel(*refs):
        if use_mask:
            q_ref, k_ref, v_ref, msk_ref, o_ref, m_scr, l_scr, acc_scr = refs
        else:
            q_ref, k_ref, v_ref, o_ref, m_scr, l_scr, acc_scr = refs
            msk_ref = None
        kv_idx = pl.program_id(3)

        @pl.when(kv_idx == 0)
        def _init():
            m_scr[...] = jnp.full_like(m_scr, _NEG_INF)
            l_scr[...] = jnp.zeros_like(l_scr)
            acc_scr[...] = jnp.zeros_like(acc_scr)

        keep = None
        if use_mask:
            keep = msk_ref[...] != 0                                     # [tq, tkv]
        if seq_padded:
            col = lax.broadcasted_iota(jnp.int32, (q_ref.shape[0], tkv), 1)
            valid = (kv_idx * tkv + col) < seq_len
            keep = valid if keep is None else jnp.logical_and(keep, valid)

        for hh in range(gh):  # tiny static loop (typically 1-2 heads per lane group)
            lo = hh * D
            q = q_ref[:, lo:lo + D]                                      # [tq, D] bf16
            k = k_ref[:, lo:lo + D]                                      # [tkv, D] bf16
            v = v_ref[:, lo:lo + D]
            s = lax.dot_general(q, k, (((1,), (1,)), ((), ())),
                                preferred_element_type=jnp.float32)      # [tq, tkv] f32
            if keep is not None:
                s = jnp.where(keep, s, _NEG_INF)
            m_old = m_scr[:, hh:hh + 1]
            m_new = jnp.maximum(m_old, jnp.max(s, axis=1, keepdims=True))
            alpha = jnp.exp(m_old - m_new)
            p = jnp.exp(s - m_new)
            l_scr[:, hh:hh + 1] = alpha * l_scr[:, hh:hh + 1] + jnp.sum(
                p, axis=1, keepdims=True)
            pv = jnp.dot(p.astype(jnp.bfloat16), v,
                         preferred_element_type=jnp.float32)             # [tq, D] f32
            acc_scr[:, lo:lo + D] = alpha * acc_scr[:, lo:lo + D] + pv
            m_scr[:, hh:hh + 1] = m_new

        @pl.when(kv_idx == pl.num_programs(3) - 1)
        def _finalize():
            if gh * D != o_ref.shape[1]:
                o_ref[...] = jnp.zeros_like(o_ref)  # clear padded tail lanes
            for hh in range(gh):
                lo = hh * D
                inv = pl.reciprocal(l_scr[:, hh:hh + 1], approx=False)
                o_ref[:, lo:lo + D] = acc_scr[:, lo:lo + D] * inv

    return kernel


def _attention(qkv, mask_bqk, *, gh, head_dim, ghd, seq_len, tq, tkv, vmem_limit):
    _, B, Sp, HDp = qkv.shape
    HG = HDp // ghd
    grid = (B, Sp // tq, HG, Sp // tkv)

    q_spec = pl.BlockSpec((None, None, tq, ghd), lambda b, qi, hg, kv: (0, b, qi, hg))
    k_spec = pl.BlockSpec((None, None, tkv, ghd), lambda b, qi, hg, kv: (1, b, kv, hg))
    v_spec = pl.BlockSpec((None, None, tkv, ghd), lambda b, qi, hg, kv: (2, b, kv, hg))
    out_spec = pl.BlockSpec((tq, ghd), lambda b, qi, hg, kv: (qi, b * HG + hg))
    out_shape = jax.ShapeDtypeStruct((Sp, B * HDp), jnp.float32)
    scratch = [pltpu.VMEM((tq, gh), jnp.float32),    # running max   (per head in group)
               pltpu.VMEM((tq, gh), jnp.float32),    # running sum
               pltpu.VMEM((tq, ghd), jnp.float32)]   # running PV accumulator
    cp = pltpu.CompilerParams(
        dimension_semantics=("parallel", "parallel", "parallel", "arbitrary"),
        vmem_limit_bytes=vmem_limit)

    kernel = _make_attention_kernel(gh=gh, head_dim=head_dim, seq_len=seq_len,
                                    tkv=tkv, seq_padded=(Sp != seq_len),
                                    use_mask=mask_bqk is not None)

    if mask_bqk is None:
        return pl.pallas_call(
            kernel, grid=grid,
            in_specs=[q_spec, k_spec, v_spec],
            out_specs=out_spec, out_shape=out_shape,
            scratch_shapes=scratch, compiler_params=cp,
        )(qkv, qkv, qkv)

    m_spec = pl.BlockSpec((None, tq, tkv), lambda b, qi, hg, kv: (b, qi, kv))
    return pl.pallas_call(
        kernel, grid=grid,
        in_specs=[q_spec, k_spec, v_spec, m_spec],
        out_specs=out_spec, out_shape=out_shape,
        scratch_shapes=scratch, compiler_params=cp,
    )(qkv, qkv, qkv, mask_bqk)


# ---------------------------------------------------------------------------
# Module wrapper
# ---------------------------------------------------------------------------
def multi_head_attention(params, query, key, value, mask=None):
    """
    query/key/value: [S, B, E] f32
    mask: optional [S, S, B] (nonzero = attend), as in the PyTorch module.
    returns: [S, B, E] f32
    """
    S, B, E = query.shape
    H = params["num_heads"]
    D = params["head_dim"]
    HD = H * D
    scale = 1.0 / math.sqrt(D)

    vmem_limit, tq_pref = _tpu_geometry()

    # Head grouping: smallest group of heads whose combined width is lane aligned.
    gh = next((g for g in range(1, H + 1)
               if H % g == 0 and (g * D) % 128 == 0), None)
    if gh is None:
        gh = H
        HDp = _round_up(HD, 128)
        ghd = HDp
    else:
        HDp = HD
        ghd = gh * D

    # Sequence tiling for the online-softmax loop.
    S8 = _round_up(S, 8)
    if S8 <= tq_pref:
        tq, Sp = S8, S8
    else:
        tq = tq_pref
        Sp = _round_up(S, tq)
    tkv = 2 * tq if Sp % (2 * tq) == 0 else tq

    # Operands: [S,B,E] -> b-major [B*Sp, E] bf16 (one-time transpose; pays for itself).
    def prep(x):
        xb = jnp.transpose(x, (1, 0, 2))
        if Sp != S:
            xb = jnp.pad(xb, ((0, 0), (0, Sp - S), (0, 0)))
        return xb.reshape(B * Sp, E).astype(jnp.bfloat16)

    def pad_cols(a, n):
        if a.shape[-1] == n:
            return a
        widths = [(0, 0)] * (a.ndim - 1) + [(0, n - a.shape[-1])]
        return jnp.pad(a, widths)

    # Fold the 1/sqrt(D) score scaling into the Q projection (mathematically identical).
    wq = params["wq"] * scale
    bq = params["bq"] * scale

    if (query is key) and (query is value):
        # Self-attention fast path: de-duplicated activations + fused [E, 3*HDp] weights.
        x = prep(query)
        w3 = jnp.concatenate(
            [pad_cols(wq, HDp), pad_cols(params["wk"], HDp), pad_cols(params["wv"], HDp)],
            axis=1).astype(jnp.bfloat16)
        b3 = jnp.concatenate(
            [pad_cols(bq, HDp), pad_cols(params["bk"], HDp), pad_cols(params["bv"], HDp)]
        )[None, :]
        qkv = _fused_qkv_projection_self(x, w3, b3, HDp, vmem_limit)
    else:
        b3 = jnp.stack([bq, params["bk"], params["bv"]], axis=0)
        qkv = _fused_qkv_projection_general(
            prep(query), prep(key), prep(value),
            wq.astype(jnp.bfloat16), params["wk"].astype(jnp.bfloat16),
            params["wv"].astype(jnp.bfloat16), b3, vmem_limit)

    N = B * Sp
    if qkv.shape[1] != N:
        qkv = qkv[:, :N, :]
    qkv = qkv.reshape(3, B, Sp, HDp)  # free reshape (b-major rows)

    if mask is None:
        mask_bqk = None
    else:
        # [S, S, B] -> [B, S, S] int8 (4x less HBM than a dense f32 mask)
        mask_bqk = (jnp.transpose(mask, (2, 0, 1)) != 0).astype(jnp.int8)
        if Sp != S:
            mask_bqk = jnp.pad(mask_bqk, ((0, 0), (0, Sp - S), (0, Sp - S)))

    out = _attention(qkv, mask_bqk, gh=gh, head_dim=D, ghd=ghd, seq_len=S,
                     tq=tq, tkv=tkv, vmem_limit=vmem_limit)   # [Sp, B*HDp] f32
    out = out.reshape(Sp, B, HDp)                             # free reshape
    if Sp != S or HDp != HD:
        out = out[:S, :, :HD]
    return out.reshape(S, B, HD)


# ---------------------------------------------------------------------------
# Pure-JAX reference (mirrors the PyTorch forward exactly) for verification
# ---------------------------------------------------------------------------
def reference_mha(params, query, key, value, mask=None):
    S, B, E = query.shape
    H, D = params["num_heads"], params["head_dim"]

    def lin(x, w, b):
        return (x.reshape(S * B, E) @ w + b).reshape(S, B, H, D)

    q = lin(query, params["wq"], params["bq"])
    k = lin(key, params["wk"], params["bk"])
    v = lin(value, params["wv"], params["bv"])
    scores = (1.0 / math.sqrt(D)) * jnp.einsum("ibhd,jbhd->ijbh", q, k)
    if mask is not None:
        m = mask[..., None]  # [S, S, B, 1]
        scores = jnp.where(m == 0, -jnp.inf, scores)
    scores = jax.nn.softmax(scores, axis=1)
    out = jnp.einsum("ijbh,jbhd->ibhd", scores, v)
    return out.reshape(S, B, H * D)


def init_params(key, embed_dim, num_heads):
    head_dim = embed_dim // num_heads
    hd = num_heads * head_dim
    keys = jax.random.split(key, 6)
    bound = 1.0 / math.sqrt(embed_dim)

    def u(k, shape):
        return jax.random.uniform(k, shape, jnp.float32, -bound, bound)

    # weights stored pre-transposed: [embed_dim, num_heads*head_dim]
    return {
        "num_heads": num_heads,
        "head_dim": head_dim,
        "wq": u(keys[0], (embed_dim, hd)),
        "bq": u(keys[1], (hd,)),
        "wk": u(keys[2], (embed_dim, hd)),
        "bk": u(keys[3], (hd,)),
        "wv": u(keys[4], (embed_dim, hd)),
        "bv": u(keys[5], (hd,)),
    }


if __name__ == "__main__":
    def check(name, out, ref, atol=5e-2, rtol=5e-2):
        assert out.shape == ref.shape, (name, out.shape, ref.shape)
        err = float(jnp.max(jnp.abs(out - ref)))
        assert jnp.allclose(out, ref, atol=atol, rtol=rtol), (
            f"{name}: mismatch vs reference, max abs diff = {err}")

    keys = jax.random.split(jax.random.PRNGKey(0), 8)

    # --- small config (module-sized example shapes) ---
    SEQ, BATCH, EMBED, HEADS = 8, 2, 32, 4
    params = init_params(keys[0], EMBED, HEADS)
    query = jax.random.normal(keys[1], (SEQ, BATCH, EMBED), jnp.float32)
    key_t = jax.random.normal(keys[2], (SEQ, BATCH, EMBED), jnp.float32)
    value = jax.random.normal(keys[3], (SEQ, BATCH, EMBED), jnp.float32)
    causal = jnp.tril(jnp.ones((SEQ, SEQ), jnp.float32))
    mask = jnp.broadcast_to(causal[:, :, None], (SEQ, SEQ, BATCH))

    out = jax.block_until_ready(multi_head_attention(params, query, key_t, value, mask))
    check("small/masked cross-attention", out,
          reference_mha(params, query, key_t, value, mask))

    out = jax.block_until_ready(multi_head_attention(params, query, query, query, None))
    check("small/self-attention fast path", out,
          reference_mha(params, query, query, query, None))

    # --- medium config: exercises head grouping, sequence padding and the
    #     KV-tiled online-softmax across multiple q / kv tiles ---
    SEQ2, BATCH2, EMBED2, HEADS2 = 640, 2, 256, 4
    params2 = init_params(keys[4], EMBED2, HEADS2)
    query2 = jax.random.normal(keys[5], (SEQ2, BATCH2, EMBED2), jnp.float32)
    key2 = jax.random.normal(keys[6], (SEQ2, BATCH2, EMBED2), jnp.float32)
    value2 = jax.random.normal(keys[7], (SEQ2, BATCH2, EMBED2), jnp.float32)
    causal2 = jnp.tril(jnp.ones((SEQ2, SEQ2), jnp.float32))
    mask2 = jnp.broadcast_to(causal2[:, :, None], (SEQ2, SEQ2, BATCH2))

    out2 = jax.block_until_ready(
        multi_head_attention(params2, query2, key2, value2, mask2))
    check("medium/masked cross-attention", out2,
          reference_mha(params2, query2, key2, value2, mask2))

    print("KERNEL_OK")
</pallas_src>

<mosaic_0001>
module attributes {stable_mosaic.version = 11 : i64} {
  func.func @_qkv_proj3_kernel(%arg0: i32, %arg1: i32, %arg2: i32, %arg3: memref<16x128xbf16, #tpu.memory_space<vmem>>, %arg4: memref<16x128xbf16, #tpu.memory_space<vmem>>, %arg5: memref<16x128xbf16, #tpu.memory_space<vmem>>, %arg6: memref<128x128xbf16, #tpu.memory_space<vmem>>, %arg7: memref<128x128xbf16, #tpu.memory_space<vmem>>, %arg8: memref<128x128xbf16, #tpu.memory_space<vmem>>, %arg9: memref<3x128xf32, #tpu.memory_space<vmem>>, %arg10: memref<3x16x128xbf16, #tpu.memory_space<vmem>>, %arg11: memref<16x128xf32, #tpu.memory_space<vmem>>, %arg12: memref<16x128xf32, #tpu.memory_space<vmem>>, %arg13: memref<16x128xf32, #tpu.memory_space<vmem>>) attributes {dimension_semantics = [#tpu.dimension_semantics<parallel>, #tpu.dimension_semantics<parallel>, #tpu.dimension_semantics<arbitrary>], iteration_bounds = array<i64: 1, 1, 1>, scalar_prefetch = 0 : i64, scratch_operands = 3 : i64, tpu.core_type = #tpu.core_type<tc>, window_params = [{transform_indices = @transform_0, window_bounds = array<i64: 16, 128>}, {transform_indices = @transform_1, window_bounds = array<i64: 16, 128>}, {transform_indices = @transform_2, window_bounds = array<i64: 16, 128>}, {transform_indices = @transform_3, window_bounds = array<i64: 128, 128>}, {transform_indices = @transform_4, window_bounds = array<i64: 128, 128>}, {transform_indices = @transform_5, window_bounds = array<i64: 128, 128>}, {transform_indices = @transform_6, window_bounds = array<i64: 3, 128>}, {transform_indices = @transform_7, window_bounds = array<i64: 3, 16, 128>}]} {
    %c0_i32 = arith.constant 0 : i32
    %0 = arith.cmpi eq, %arg2, %c0_i32 : i32
    %1 = arith.extui %0 : i1 to i32
    %c0_i32_0 = arith.constant 0 : i32
    %2 = arith.cmpi ne, %1, %c0_i32_0 : i32
    scf.if %2 {
      %cst_28 = arith.constant 0.000000e+00 : f32
      %24 = vector.broadcast %cst_28 : f32 to vector<16x128xf32>
      %c0_29 = arith.constant 0 : index
      %c0_30 = arith.constant 0 : index
      %25 = vector.load %arg11[%c0_29, %c0_30] : memref<16x128xf32, #tpu.memory_space<vmem>>, vector<16x128xf32>
      tpu.vector_store %arg11[%c0_29, %c0_30], %24 {strides = array<i32>} : memref<16x128xf32, #tpu.memory_space<vmem>>, vector<16x128xf32>,
      %cst_31 = arith.constant 0.000000e+00 : f32
      %26 = vector.broadcast %cst_31 : f32 to vector<16x128xf32>
      %c0_32 = arith.constant 0 : index
      %c0_33 = arith.constant 0 : index
      %27 = vector.load %arg12[%c0_32, %c0_33] : memref<16x128xf32, #tpu.memory_space<vmem>>, vector<16x128xf32>
      tpu.vector_store %arg12[%c0_32, %c0_33], %26 {strides = array<i32>} : memref<16x128xf32, #tpu.memory_space<vmem>>, vector<16x128xf32>,
      %cst_34 = arith.constant 0.000000e+00 : f32
      %28 = vector.broadcast %cst_34 : f32 to vector<16x128xf32>
      %c0_35 = arith.constant 0 : index
      %c0_36 = arith.constant 0 : index
      %29 = vector.load %arg13[%c0_35, %c0_36] : memref<16x128xf32, #tpu.memory_space<vmem>>, vector<16x128xf32>
      tpu.vector_store %arg13[%c0_35, %c0_36], %28 {strides = array<i32>} : memref<16x128xf32, #tpu.memory_space<vmem>>, vector<16x128xf32>,
    } else {
    }
    %c0 = arith.constant 0 : index
    %c0_1 = arith.constant 0 : index
    %3 = vector.load %arg11[%c0, %c0_1] : memref<16x128xf32, #tpu.memory_space<vmem>>, vector<16x128xf32>
    %c0_2 = arith.constant 0 : index
    %c0_3 = arith.constant 0 : index
    %4 = vector.load %arg3[%c0_2, %c0_3] : memref<16x128xbf16, #tpu.memory_space<vmem>>, vector<16x128xbf16>
    %c0_4 = arith.constant 0 : index
    %c0_5 = arith.constant 0 : index
    %5 = vector.load %arg6[%c0_4, %c0_5] : memref<128x128xbf16, #tpu.memory_space<vmem>>, vector<128x128xbf16>
    %cst = arith.constant dense<0.000000e+00> : vector<16x128xf32>
    %6 = tpu.matmul %4, %5, %cst {dimension_numbers = #tpu.dot_dimension_numbers<[1], [0], [0], [1], [0, 0, 1, 1], [], []>} : vector<16x128xbf16>, vector<128x128xbf16>, vector<16x128xf32> -> vector<16x128xf32>
    %7 = arith.addf %3, %6 : vector<16x128xf32>
    %c0_6 = arith.constant 0 : index
    %c0_7 = arith.constant 0 : index
    %8 = vector.load %arg11[%c0_6, %c0_7] : memref<16x128xf32, #tpu.memory_space<vmem>>, vector<16x128xf32>
    tpu.vector_store %arg11[%c0_6, %c0_7], %7 {strides = array<i32>} : memref<16x128xf32, #tpu.memory_space<vmem>>, vector<16x128xf32>,
    %c0_8 = arith.constant 0 : index
    %c0_9 = arith.constant 0 : index
    %9 = vector.load %arg12[%c0_8, %c0_9] : memref<16x128xf32, #tpu.memory_space<vmem>>, vector<16x128xf32>
    %c0_10 = arith.constant 0 : index
    %c0_11 = arith.constant 0 : index
    %10 = vector.load %arg4[%c0_10, %c0_11] : memref<16x128xbf16, #tpu.memory_space<vmem>>, vector<16x128xbf16>
    %c0_12 = arith.constant 0 : index
    %c0_13 = arith.constant 0 : index
    %11 = vector.load %arg7[%c0_12, %c0_13] : memref<128x128xbf16, #tpu.memory_space<vmem>>, vector<128x128xbf16>
    %cst_14 = arith.constant dense<0.000000e+00> : vector<16x128xf32>
    %12 = tpu.matmul %10, %11, %cst_14 {dimension_numbers = #tpu.dot_dimension_numbers<[1], [0], [0], [1], [0, 0, 1, 1], [], []>} : vector<16x128xbf16>, vector<128x128xbf16>, vector<16x128xf32> -> vector<16x128xf32>
    %13 = arith.addf %9, %12 : vector<16x128xf32>
    %c0_15 = arith.constant 0 : index
    %c0_16 = arith.constant 0 : index
    %14 = vector.load %arg12[%c0_15, %c0_16] : memref<16x128xf32, #tpu.memory_space<vmem>>, vector<16x128xf32>
    tpu.vector_store %arg12[%c0_15, %c0_16], %13 {strides = array<i32>} : memref<16x128xf32, #tpu.memory_space<vmem>>, vector<16x128xf32>,
    %c0_17 = arith.constant 0 : index
    %c0_18 = arith.constant 0 : index
    %15 = vector.load %arg13[%c0_17, %c0_18] : memref<16x128xf32, #tpu.memory_space<vmem>>, vector<16x128xf32>
    %c0_19 = arith.constant 0 : index
    %c0_20 = arith.constant 0 : index
    %16 = vector.load %arg5[%c0_19, %c0_20] : memref<16x128xbf16, #tpu.memory_space<vmem>>, vector<16x128xbf16>
    %c0_21 = arith.constant 0 : index
    %c0_22 = arith.constant 0 : index
    %17 = vector.load %arg8[%c0_21, %c0_22] : memref<128x128xbf16, #tpu.memory_space<vmem>>, vector<128x128xbf16>
    %cst_23 = arith.constant dense<0.000000e+00> : vector<16x128xf32>
    %18 = tpu.matmul %16, %17, %cst_23 {dimension_numbers = #tpu.dot_dimension_numbers<[1], [0], [0], [1], [0, 0, 1, 1], [], []>} : vector<16x128xbf16>, vector<128x128xbf16>, vector<16x128xf32> -> vector<16x128xf32>
    %19 = arith.addf %15, %18 : vector<16x128xf32>
    %c0_24 = arith.constant 0 : index
    %c0_25 = arith.constant 0 : index
    %20 = vector.load %arg13[%c0_24, %c0_25] : memref<16x128xf32, #tpu.memory_space<vmem>>, vector<16x128xf32>
    tpu.vector_store %arg13[%c0_24, %c0_25], %19 {strides = array<i32>} : memref<16x128xf32, #tpu.memory_space<vmem>>, vector<16x128xf32>,
    %c0_i32_26 = arith.constant 0 : i32
    %21 = arith.cmpi eq, %arg2, %c0_i32_26 : i32
    %22 = arith.extui %21 : i1 to i32
    %c0_i32_27 = arith.constant 0 : i32
    %23 = arith.cmpi ne, %22, %c0_i32_27 : i32
    scf.if %23 {
      %c0_28 = arith.constant 0 : index
      %c0_29 = arith.constant 0 : index
      %24 = vector.load %arg11[%c0_28, %c0_29] : memref<16x128xf32, #tpu.memory_space<vmem>>, vector<16x128xf32>
      %c0_30 = arith.constant 0 : index
      %c0_31 = arith.constant 0 : index
      %25 = vector.load %arg9[%c0_30, %c0_31] : memref<3x128xf32, #tpu.memory_space<vmem>>, vector<1x128xf32>
      %26 = vector.broadcast %25 : vector<1x128xf32> to vector<16x128xf32>
      %27 = arith.addf %24, %26 : vector<16x128xf32>
      %28 = arith.truncf %27 : vector<16x128xf32> to vector<16x128xbf16>
      %c0_32 = arith.constant 0 : index
      %c0_33 = arith.constant 0 : index
      %c0_34 = arith.constant 0 : index
      %29 = vector.load %arg10[%c0_32, %c0_33, %c0_34] : memref<3x16x128xbf16, #tpu.memory_space<vmem>>, vector<1x16x128xbf16>
      %30 = vector.shape_cast %29 : vector<1x16x128xbf16> to vector<16x128xbf16>
      %31 = vector.shape_cast %28 : vector<16x128xbf16> to vector<1x16x128xbf16>
      tpu.vector_store %arg10[%c0_32, %c0_33, %c0_34], %31 {strides = array<i32>} : memref<3x16x128xbf16, #tpu.memory_space<vmem>>, vector<1x16x128xbf16>,
      %c0_35 = arith.constant 0 : index
      %c0_36 = arith.constant 0 : index
      %32 = vector.load %arg12[%c0_35, %c0_36] : memref<16x128xf32, #tpu.memory_space<vmem>>, vector<16x128xf32>
      %c1 = arith.constant 1 : index
      %c0_37 = arith.constant 0 : index
      %33 = vector.load %arg9[%c1, %c0_37] : memref<3x128xf32, #tpu.memory_space<vmem>>, vector<1x128xf32>
      %34 = vector.broadcast %33 : vector<1x128xf32> to vector<16x128xf32>
      %35 = arith.addf %32, %34 : vector<16x128xf32>
      %36 = arith.truncf %35 : vector<16x128xf32> to vector<16x128xbf16>
      %c1_38 = arith.constant 1 : index
      %c0_39 = arith.constant 0 : index
      %c0_40 = arith.constant 0 : index
      %37 = vector.load %arg10[%c1_38, %c0_39, %c0_40] : memref<3x16x128xbf16, #tpu.memory_space<vmem>>, vector<1x16x128xbf16>
      %38 = vector.shape_cast %37 : vector<1x16x128xbf16> to vector<16x128xbf16>
      %39 = vector.shape_cast %36 : vector<16x128xbf16> to vector<1x16x128xbf16>
      tpu.vector_store %arg10[%c1_38, %c0_39, %c0_40], %39 {strides = array<i32>} : memref<3x16x128xbf16, #tpu.memory_space<vmem>>, vector<1x16x128xbf16>,
      %c0_41 = arith.constant 0 : index
      %c0_42 = arith.constant 0 : index
      %40 = vector.load %arg13[%c0_41, %c0_42] : memref<16x128xf32, #tpu.memory_space<vmem>>, vector<16x128xf32>
      %c2 = arith.constant 2 : index
      %c0_43 = arith.constant 0 : index
      %41 = vector.load %arg9[%c2, %c0_43] : memref<3x128xf32, #tpu.memory_space<vmem>>, vector<1x128xf32>
      %42 = vector.broadcast %41 : vector<1x128xf32> to vector<16x128xf32>
      %43 = arith.addf %40, %42 : vector<16x128xf32>
      %44 = arith.truncf %43 : vector<16x128xf32> to vector<16x128xbf16>
      %c2_44 = arith.constant 2 : index
      %c0_45 = arith.constant 0 : index
      %c0_46 = arith.constant 0 : index
      %45 = vector.load %arg10[%c2_44, %c0_45, %c0_46] : memref<3x16x128xbf16, #tpu.memory_space<vmem>>, vector<1x16x128xbf16>
      %46 = vector.shape_cast %45 : vector<1x16x128xbf16> to vector<16x128xbf16>
      %47 = vector.shape_cast %44 : vector<16x128xbf16> to vector<1x16x128xbf16>
      tpu.vector_store %arg10[%c2_44, %c0_45, %c0_46], %47 {strides = array<i32>} : memref<3x16x128xbf16, #tpu.memory_space<vmem>>, vector<1x16x128xbf16>,
    } else {
    }
    return
  }
  func.func @transform_0(%arg0: i32, %arg1: i32, %arg2: i32) -> (i32, i32) {
    %c0_i32 = arith.constant 0 : i32
    return %arg0, %arg2 : i32, i32
  }
  func.func @transform_1(%arg0: i32, %arg1: i32, %arg2: i32) -> (i32, i32) {
    %c0_i32 = arith.constant 0 : i32
    return %arg0, %arg2 : i32, i32
  }
  func.func @transform_2(%arg0: i32, %arg1: i32, %arg2: i32) -> (i32, i32) {
    %c0_i32 = arith.constant 0 : i32
    return %arg0, %arg2 : i32, i32
  }
  func.func @transform_3(%arg0: i32, %arg1: i32, %arg2: i32) -> (i32, i32) {
    %c0_i32 = arith.constant 0 : i32
    return %arg2, %arg1 : i32, i32
  }
  func.func @transform_4(%arg0: i32, %arg1: i32, %arg2: i32) -> (i32, i32) {
    %c0_i32 = arith.constant 0 : i32
    return %arg2, %arg1 : i32, i32
  }
  func.func @transform_5(%arg0: i32, %arg1: i32, %arg2: i32) -> (i32, i32) {
    %c0_i32 = arith.constant 0 : i32
    return %arg2, %arg1 : i32, i32
  }
  func.func @transform_6(%arg0: i32, %arg1: i32, %arg2: i32) -> (i32, i32) {
    %c0_i32 = arith.constant 0 : i32
    %c0_i32_0 = arith.constant 0 : i32
    return %c0_i32, %arg1 : i32, i32
  }
  func.func @transform_7(%arg0: i32, %arg1: i32, %arg2: i32) -> (i32, i32, i32) {
    %c0_i32 = arith.constant 0 : i32
    %c0_i32_0 = arith.constant 0 : i32
    return %c0_i32, %arg0, %arg1 : i32, i32, i32
  }
}

</mosaic_0001>

<llo_original>
// kernel: tpu_custom_call.1
$region0: #{tpu_custom_call.1}
  #allocation0 [shape = 'u32[]', space=smem, size = 0x4, offset = 0x4, fixed_abs, tag = 'smem constant byte address 0x4 - core index']
  #allocation1 [shape = 'u32[144,128]{1,0:T(1,128)}', space=vmem, size = 0x12000, scoped, tag = 'internal scratch']
  #allocation2 [shape = 'f32[16,128]{1,0:T(8,128)}', space=vmem, size = 0x2000, scoped, tag = 'scratch operand']
  #allocation3 [shape = 'f32[16,128]{1,0:T(8,128)}', space=vmem, size = 0x2000, scoped, tag = 'scratch operand']
  #allocation4 [shape = 'f32[16,128]{1,0:T(8,128)}', space=vmem, size = 0x2000, scoped, tag = 'scratch operand']
  %s0 = inlined_call_operand.hbm [shape: bf16[16,128], index: 0, kind: input, shape index: {}]
  %s1 = inlined_call_operand.hbm [shape: bf16[16,128], index: 1, kind: input, shape index: {}]
  %s2 = inlined_call_operand.hbm [shape: bf16[16,128], index: 2, kind: input, shape index: {}]
  %s3 = inlined_call_operand.hbm [shape: bf16[128,128], index: 3, kind: input, shape index: {}]
  %s4 = inlined_call_operand.hbm [shape: bf16[128,128], index: 4, kind: input, shape index: {}]
  %s5 = inlined_call_operand.hbm [shape: bf16[128,128], index: 5, kind: input, shape index: {}]
  %s6 = inlined_call_operand.vmem [shape: f32[3,128], index: 6, kind: input, shape index: {}]
  %s7 = inlined_call_operand.hbm [shape: bf16[3,16,128], index: 7, kind: output, shape index: {}]
  %s8 = sld [smem:[#allocation0]]
  $region70: #{tpu_custom_call.1} parent=0
    _
  %s10 = ssub.s32 1, %s8
  %s11 = scalar_select 0, %s10, %s8
  $region1: #{tpu_custom_call.1} parent=0
    #allocation5 [shape = 'u8[4096]{0}', space=vmem, size = 0x1000, scoped, tag = 'input window, operand 0, single buffered']
    #allocation6 [shape = 's32[1]{0}', space=sflag, size = 0x4, scoped, tag = 'scoped memory for tpu_custom_call.1']
    #allocation7 [shape = 's32[1]{0}', space=sflag, size = 0x4, scoped, tag = 'scoped memory for tpu_custom_call.1']
    #allocation8 [shape = 'u8[4096]{0}', space=vmem, size = 0x1000, scoped, tag = 'input window, operand 1, single buffered']
    #allocation9 [shape = 's32[1]{0}', space=sflag, size = 0x4, scoped, tag = 'scoped memory for tpu_custom_call.1']
    #allocation10 [shape = 'u8[4096]{0}', space=vmem, size = 0x1000, scoped, tag = 'input window, operand 2, single buffered']
    #allocation11 [shape = 'u8[32768]{0}', space=vmem, size = 0x8000, scoped, tag = 'input window, operand 3, single buffered']
    #allocation12 [shape = 's32[1]{0}', space=sflag, size = 0x4, scoped, tag = 'scoped memory for tpu_custom_call.1']
    #allocation13 [shape = 'u8[32768]{0}', space=vmem, size = 0x8000, scoped, tag = 'input window, operand 4, single buffered']
    #allocation14 [shape = 'u8[32768]{0}', space=vmem, size = 0x8000, scoped, tag = 'input window, operand 5, single buffered']
    #allocation15 [shape = 's32[1]{0}', space=sflag, size = 0x4, scoped, tag = 'scoped memory for tpu_custom_call.1']
    #allocation16 [shape = 'u8[12288]{0}', space=vmem, size = 0x3000, scoped, tag = 'output window, operand 0, single buffered']
    %12 = vsyncpa [#allocation6], 0
    %13 = vsyncpa [#allocation9], 0
    %14 = vsyncpa [#allocation12], 0
    %15 = vsyncpa [#allocation15], 0
    %16 = vsyncpa [#allocation7], 0
    // Predicated region
    $region2: #{tpu_custom_call.1} parent=1 // pred_check
      _
    $region3: #{tpu_custom_call.1} parent=1 // pred_check_branch
      %18 = sbr.rel (0) target = $region5
    $region4: #{tpu_custom_call.1} parent=1 // pred_region
      %s20 = ssub.s32 128, 128
      %21 = vsyncadd [#allocation6], %s20
      %s22 = sshll.u32 [#allocation5], 4
      %s23 = int_to_ptr.vmem [resolvable:$true] %s22
      %28 = dma.hbm_to_vmem [thread:$0]  %s0, 128, %s23, [#allocation6], 64, 64, 4
    $region5: #{tpu_custom_call.1} parent=1 // pred_fallthru
      _
    // Predicated region
    $region6: #{tpu_custom_call.1} parent=1 // pred_check
      _
    $region7: #{tpu_custom_call.1} parent=1 // pred_check_branch
      %30 = sbr.rel (0) target = $region9
    $region8: #{tpu_custom_call.1} parent=1 // pred_region
      %s32 = ssub.s32 128, 128
      %33 = vsyncadd [#allocation9], %s32
      %s34 = sshll.u32 [#allocation8], 4
      %s35 = int_to_ptr.vmem [resolvable:$true] %s34
      %40 = dma.hbm_to_vmem [thread:$0]  %s1, 128, %s35, [#allocation9], 64, 64, 4
    $region9: #{tpu_custom_call.1} parent=1 // pred_fallthru
      _
    // Predicated region
    $region10: #{tpu_custom_call.1} parent=1 // pred_check
      _
    $region11: #{tpu_custom_call.1} parent=1 // pred_check_branch
      %42 = sbr.rel (0) target = $region13
    $region12: #{tpu_custom_call.1} parent=1 // pred_region
      %s44 = ssub.s32 128, 128
      %45 = vsyncadd [#allocation9], %s44
      %s46 = sshll.u32 [#allocation10], 4
      %s47 = int_to_ptr.vmem [resolvable:$true] %s46
      %52 = dma.hbm_to_vmem [thread:$0]  %s2, 128, %s47, [#allocation9], 64, 64, 4
    $region13: #{tpu_custom_call.1} parent=1 // pred_fallthru
      _
    // Predicated region
    $region14: #{tpu_custom_call.1} parent=1 // pred_check
      _
    $region15: #{tpu_custom_call.1} parent=1 // pred_check_branch
      %54 = sbr.rel (0) target = $region17
    $region16: #{tpu_custom_call.1} parent=1 // pred_region
      %s56 = ssub.s32 1024, 1024
      %57 = vsyncadd [#allocation12], %s56
      %s58 = sshll.u32 [#allocation11], 4
      %s59 = int_to_ptr.vmem [resolvable:$true] %s58
      %64 = dma.hbm_to_vmem [thread:$0]  %s3, 1024, %s59, [#allocation12], 64, 64, 4
    $region17: #{tpu_custom_call.1} parent=1 // pred_fallthru
      _
    // Predicated region
    $region18: #{tpu_custom_call.1} parent=1 // pred_check
      _
    $region19: #{tpu_custom_call.1} parent=1 // pred_check_branch
      %66 = sbr.rel (0) target = $region21
    $region20: #{tpu_custom_call.1} parent=1 // pred_region
      %s68 = ssub.s32 1024, 1024
      %69 = vsyncadd [#allocation12], %s68
      %s70 = sshll.u32 [#allocation13], 4
      %s71 = int_to_ptr.vmem [resolvable:$true] %s70
      %76 = dma.hbm_to_vmem [thread:$0]  %s4, 1024, %s71, [#allocation12], 64, 64, 4
    $region21: #{tpu_custom_call.1} parent=1 // pred_fallthru
      _
    // Predicated region
    $region22: #{tpu_custom_call.1} parent=1 // pred_check
      _
    $region23: #{tpu_custom_call.1} parent=1 // pred_check_branch
      %78 = sbr.rel (0) target = $region25
    $region24: #{tpu_custom_call.1} parent=1 // pred_region
      %s80 = ssub.s32 1024, 1024
      %81 = vsyncadd [#allocation15], %s80
      %s82 = sshll.u32 [#allocation14], 4
      %s83 = int_to_ptr.vmem [resolvable:$true] %s82
      %88 = dma.hbm_to_vmem [thread:$0]  %s5, 1024, %s83, [#allocation15], 64, 64, 4
    $region25: #{tpu_custom_call.1} parent=1 // pred_fallthru
      _
    // Predicated region
    $region26: #{tpu_custom_call.1} parent=1 // pred_check
      _
    $region27: #{tpu_custom_call.1} parent=1 // pred_check_branch
      %90 = sbr.rel (0) target = $region29
    $region28: #{tpu_custom_call.1} parent=1 // pred_region
      _
    $region29: #{tpu_custom_call.1} parent=1 // pred_fallthru
      _
    // Predicated region
    $region30: #{tpu_custom_call.1} parent=1 // pred_check
      _
    $region31: #{tpu_custom_call.1} parent=1 // pred_check_branch
      %92 = sbr.rel (0) target = $region33
    $region32: #{tpu_custom_call.1} parent=1 // pred_region
      %93 = dma.done [#allocation6], 128
    $region33: #{tpu_custom_call.1} parent=1 // pred_fallthru
      _
    // Predicated region
    $region34: #{tpu_custom_call.1} parent=1 // pred_check
      _
    $region35: #{tpu_custom_call.1} parent=1 // pred_check_branch
      %95 = sbr.rel (0) target = $region37
    $region36: #{tpu_custom_call.1} parent=1 // pred_region
      %96 = dma.done [#allocation9], 128
    $region37: #{tpu_custom_call.1} parent=1 // pred_fallthru
      _
    // Predicated region
    $region38: #{tpu_custom_call.1} parent=1 // pred_check
      _
    $region39: #{tpu_custom_call.1} parent=1 // pred_check_branch
      %98 = sbr.rel (0) target = $region41
    $region40: #{tpu_custom_call.1} parent=1 // pred_region
      %99 = dma.done [#allocation9], 128
    $region41: #{tpu_custom_call.1} parent=1 // pred_fallthru
      _
    // Predicated region
    $region42: #{tpu_custom_call.1} parent=1 // pred_check
      _
    $region43: #{tpu_custom_call.1} parent=1 // pred_check_branch
      %101 = sbr.rel (0) target = $region45
    $region44: #{tpu_custom_call.1} parent=1 // pred_region
      %102 = dma.done [#allocation12], 1024
    $region45: #{tpu_custom_call.1} parent=1 // pred_fallthru
      _
    // Predicated region
    $region46: #{tpu_custom_call.1} parent=1 // pred_check
      _
    $region47: #{tpu_custom_call.1} parent=1 // pred_check_branch
      %104 = sbr.rel (0) target = $region49
    $region48: #{tpu_custom_call.1} parent=1 // pred_region
      %105 = dma.done [#allocation12], 1024
    $region49: #{tpu_custom_call.1} parent=1 // pred_fallthru
      _
    // Predicated region
    $region50: #{tpu_custom_call.1} parent=1 // pred_check
      _
    $region51: #{tpu_custom_call.1} parent=1 // pred_check_branch
      %107 = sbr.rel (0) target = $region53
    $region52: #{tpu_custom_call.1} parent=1 // pred_region
      %108 = dma.done [#allocation15], 1024
    $region53: #{tpu_custom_call.1} parent=1 // pred_fallthru
      _
    %p110 = scmp.eq.s32.totalorder 0, 0
    // Predicated region
    $region54: #{tpu_custom_call.1} parent=1 // pred_check
      %p111 = pneg %p110
    $region55: #{tpu_custom_call.1} parent=1 // pred_check_branch
      %113 = sbr.rel (%p111) target = $region57
    $region56: #{tpu_custom_call.1} parent=1 // pred_region
      %114 = vst [vmem:[#allocation2] sm:$0xff] 0.0
      %115 = vst [vmem:[#allocation2 + $0x8] sm:$0xff] 0.0
      %116 = vst [vmem:[#allocation3] sm:$0xff] 0.0
      %117 = vst [vmem:[#allocation3 + $0x8] sm:$0xff] 0.0
      %118 = vst [vmem:[#allocation4] sm:$0xff] 0.0
      %119 = vst [vmem:[#allocation4 + $0x8] sm:$0xff] 0.0
    $region57: #{tpu_custom_call.1} parent=1 // pred_fallthru
      _
    %v120 = vld [vmem:[#allocation2] sm:$0xff]
    %v121 = vld [vmem:[#allocation2 + $0x8] sm:$0xff]
    %v122 = vld [vmem:[#allocation5] sm:$0xf]
    %v123 = vld [vmem:[#allocation5 + $0x4] sm:$0xf]
    %v124 = vld [vmem:[#allocation11] sm:$0xf]
    %v125 = vld [vmem:[#allocation11 + $0x4] sm:$0xf]
    %v126 = vld [vmem:[#allocation11 + $0x8] sm:$0xf]
    %v127 = vld [vmem:[#allocation11 + $0xc] sm:$0xf]
    %v128 = vld [vmem:[#allocation11 + $0x10] sm:$0xf]
    %v129 = vld [vmem:[#allocation11 + $0x14] sm:$0xf]
    %v130 = vld [vmem:[#allocation11 + $0x18] sm:$0xf]
    %v131 = vld [vmem:[#allocation11 + $0x1c] sm:$0xf]
    %v132 = vld [vmem:[#allocation11 + $0x20] sm:$0xf]
    %v133 = vld [vmem:[#allocation11 + $0x24] sm:$0xf]
    %v134 = vld [vmem:[#allocation11 + $0x28] sm:$0xf]
    %v135 = vld [vmem:[#allocation11 + $0x2c] sm:$0xf]
    %v136 = vld [vmem:[#allocation11 + $0x30] sm:$0xf]
    %v137 = vld [vmem:[#allocation11 + $0x34] sm:$0xf]
    %v138 = vld [vmem:[#allocation11 + $0x38] sm:$0xf]
    %v139 = vld [vmem:[#allocation11 + $0x3c] sm:$0xf]
    %v142 = vunpack.c.l.b16 %v122
    %v143 = vunpack.c.l.b16 %v123
    %v144 = vpack.c.b16 %v143, %v142
    %v162 = vunpack.c.l.b16 %v124
    %v163 = vunpack.c.l.b16 %v125
    %v164 = vunpack.c.l.b16 %v126
    %v165 = vunpack.c.l.b16 %v127
    %v166 = vunpack.c.l.b16 %v128
    %v167 = vunpack.c.l.b16 %v129
    %v168 = vunpack.c.l.b16 %v130
    %v169 = vunpack.c.l.b16 %v131
    %v170 = vunpack.c.l.b16 %v132
    %v171 = vunpack.c.l.b16 %v133
    %v172 = vunpack.c.l.b16 %v134
    %v173 = vunpack.c.l.b16 %v135
    %v174 = vunpack.c.l.b16 %v136
    %v175 = vunpack.c.l.b16 %v137
    %v176 = vunpack.c.l.b16 %v138
    %v177 = vunpack.c.l.b16 %v139
    %v178 = vpack.c.b16 %v163, %v162
    %v179 = vpack.c.b16 %v165, %v164
    %v180 = vpack.c.b16 %v167, %v166
    %v181 = vpack.c.b16 %v169, %v168
    %v182 = vpack.c.b16 %v171, %v170
    %v183 = vpack.c.b16 %v173, %v172
    %v184 = vpack.c.b16 %v175, %v174
    %v185 = vpack.c.b16 %v177, %v176
    %194 = vmatprep.subr.bf16.mxu0 0
    %195 = vmatpush1.bf16.msra.mxu0 %v178
    %196 = vmatprep.subr.bf16.mxu0 0
    %197 = vmatpush1.bf16.msra.mxu0 %v179
    %198 = vmatprep.subr.bf16.mxu0 0
    %199 = vmatpush1.bf16.msra.mxu0 %v180
    %200 = vmatprep.subr.bf16.mxu0 0
    %201 = vmatpush1.bf16.msra.mxu0 %v181
    %202 = vmatprep.subr.bf16.mxu0 0
    %203 = vmatpush1.bf16.msra.mxu0 %v182
    %204 = vmatprep.subr.bf16.mxu0 0
    %205 = vmatpush1.bf16.msra.mxu0 %v183
    %206 = vmatprep.subr.bf16.mxu0 0
    %207 = vmatpush1.bf16.msra.mxu0 %v184
    %208 = vmatprep.subr.bf16.mxu0 0
    %209 = vmatpush1.bf16.msra.mxu0 %v185
    %210 = vmatprep.subr.bf16.mxu0 0
    %211 = vmatpush1.bf16.msra.mxu0 0
    %212 = vmatprep.subr.bf16.mxu0 0
    %213 = vmatpush1.bf16.msra.mxu0 0
    %214 = vmatprep.subr.bf16.mxu0 0
    %215 = vmatpush1.bf16.msra.mxu0 0
    %216 = vmatprep.subr.bf16.mxu0 0
    %217 = vmatpush1.bf16.msra.mxu0 0
    %218 = vmatprep.subr.bf16.mxu0 0
    %219 = vmatpush1.bf16.msra.mxu0 0
    %220 = vmatprep.subr.bf16.mxu0 0
    %221 = vmatpush1.bf16.msra.mxu0 0
    %222 = vmatprep.subr.bf16.mxu0 0
    %223 = vmatpush1.bf16.msra.mxu0 0
    %224 = vmatprep.subr.bf16.mxu0 0
    %225 = vmatpush1.bf16.msra.mxu0 0
    %226 = vmatprep.mubr.bf16.mxu0 0
    %227 = vmatmul.mubr.bf16.gmra.mrb[0].mxu0 %v144
    %v228 = vpop.f32.mrb[0].mxu0
    %v229 = vadd.f32 0.0, %v228
    %v230 = vpop.f32.mrb[0].mxu0
    %v231 = vpop.f32.mrb[0].mxu0
    %v232 = vadd.f32 0.0, %v231
    %v233 = vpop.f32.mrb[0].mxu0
    %234 = vdwg.mxu0
    %v235 = vadd.f32 %v120, %v229
    %v236 = vadd.f32 %v121, %v232
    %237 = vst [vmem:[#allocation2] sm:$0xff] %v235
    %238 = vst [vmem:[#allocation2 + $0x8] sm:$0xff] %v236
    %v239 = vld [vmem:[#allocation3] sm:$0xff]
    %v240 = vld [vmem:[#allocation3 + $0x8] sm:$0xff]
    %v241 = vld [vmem:[#allocation8] sm:$0xf]
    %v242 = vld [vmem:[#allocation8 + $0x4] sm:$0xf]
    %v243 = vld [vmem:[#allocation13] sm:$0xf]
    %v244 = vld [vmem:[#allocation13 + $0x4] sm:$0xf]
    %v245 = vld [vmem:[#allocation13 + $0x8] sm:$0xf]
    %v246 = vld [vmem:[#allocation13 + $0xc] sm:$0xf]
    %v247 = vld [vmem:[#allocation13 + $0x10] sm:$0xf]
    %v248 = vld [vmem:[#allocation13 + $0x14] sm:$0xf]
    %v249 = vld [vmem:[#allocation13 + $0x18] sm:$0xf]
    %v250 = vld [vmem:[#allocation13 + $0x1c] sm:$0xf]
    %v251 = vld [vmem:[#allocation13 + $0x20] sm:$0xf]
    %v252 = vld [vmem:[#allocation13 + $0x24] sm:$0xf]
    %v253 = vld [vmem:[#allocation13 + $0x28] sm:$0xf]
    %v254 = vld [vmem:[#allocation13 + $0x2c] sm:$0xf]
    %v255 = vld [vmem:[#allocation13 + $0x30] sm:$0xf]
    %v256 = vld [vmem:[#allocation13 + $0x34] sm:$0xf]
    %v257 = vld [vmem:[#allocation13 + $0x38] sm:$0xf]
    %v258 = vld [vmem:[#allocation13 + $0x3c] sm:$0xf]
    %v261 = vunpack.c.l.b16 %v241
    %v262 = vunpack.c.l.b16 %v242
    %v263 = vpack.c.b16 %v262, %v261
    %v281 = vunpack.c.l.b16 %v243
    %v282 = vunpack.c.l.b16 %v244
    %v283 = vunpack.c.l.b16 %v245
    %v284 = vunpack.c.l.b16 %v246
    %v285 = vunpack.c.l.b16 %v247
    %v286 = vunpack.c.l.b16 %v248
    %v287 = vunpack.c.l.b16 %v249
    %v288 = vunpack.c.l.b16 %v250
    %v289 = vunpack.c.l.b16 %v251
    %v290 = vunpack.c.l.b16 %v252
    %v291 = vunpack.c.l.b16 %v253
    %v292 = vunpack.c.l.b16 %v254
    %v293 = vunpack.c.l.b16 %v255
    %v294 = vunpack.c.l.b16 %v256
    %v295 = vunpack.c.l.b16 %v257
    %v296 = vunpack.c.l.b16 %v258
    %v297 = vpack.c.b16 %v282, %v281
    %v298 = vpack.c.b16 %v284, %v283
    %v299 = vpack.c.b16 %v286, %v285
    %v300 = vpack.c.b16 %v288, %v287
    %v301 = vpack.c.b16 %v290, %v289
    %v302 = vpack.c.b16 %v292, %v291
    %v303 = vpack.c.b16 %v294, %v293
    %v304 = vpack.c.b16 %v296, %v295
    %313 = vmatprep.subr.bf16.mxu0 0
    %314 = vmatpush1.bf16.msra.mxu0 %v297
    %315 = vmatprep.subr.bf16.mxu0 0
    %316 = vmatpush1.bf16.msra.mxu0 %v298
    %317 = vmatprep.subr.bf16.mxu0 0
    %318 = vmatpush1.bf16.msra.mxu0 %v299
    %319 = vmatprep.subr.bf16.mxu0 0
    %320 = vmatpush1.bf16.msra.mxu0 %v300
    %321 = vmatprep.subr.bf16.mxu0 0
    %322 = vmatpush1.bf16.msra.mxu0 %v301
    %323 = vmatprep.subr.bf16.mxu0 0
    %324 = vmatpush1.bf16.msra.mxu0 %v302
    %325 = vmatprep.subr.bf16.mxu0 0
    %326 = vmatpush1.bf16.msra.mxu0 %v303
    %327 = vmatprep.subr.bf16.mxu0 0
    %328 = vmatpush1.bf16.msra.mxu0 %v304
    %329 = vmatprep.subr.bf16.mxu0 0
    %330 = vmatpush1.bf16.msra.mxu0 0
    %331 = vmatprep.subr.bf16.mxu0 0
    %332 = vmatpush1.bf16.msra.mxu0 0
    %333 = vmatprep.subr.bf16.mxu0 0
    %334 = vmatpush1.bf16.msra.mxu0 0
    %335 = vmatprep.subr.bf16.mxu0 0
    %336 = vmatpush1.bf16.msra.mxu0 0
    %337 = vmatprep.subr.bf16.mxu0 0
    %338 = vmatpush1.bf16.msra.mxu0 0
    %339 = vmatprep.subr.bf16.mxu0 0
    %340 = vmatpush1.bf16.msra.mxu0 0
    %341 = vmatprep.subr.bf16.mxu0 0
    %342 = vmatpush1.bf16.msra.mxu0 0
    %343 = vmatprep.subr.bf16.mxu0 0
    %344 = vmatpush1.bf16.msra.mxu0 0
    %345 = vmatprep.mubr.bf16.mxu0 0
    %346 = vmatmul.mubr.bf16.gmra.mrb[0].mxu0 %v263
    %v347 = vpop.f32.mrb[0].mxu0
    %v348 = vadd.f32 0.0, %v347
    %v349 = vpop.f32.mrb[0].mxu0
    %v350 = vpop.f32.mrb[0].mxu0
    %v351 = vadd.f32 0.0, %v350
    %v352 = vpop.f32.mrb[0].mxu0
    %353 = vdwg.mxu0
    %v354 = vadd.f32 %v239, %v348
    %v355 = vadd.f32 %v240, %v351
    %356 = vst [vmem:[#allocation3] sm:$0xff] %v354
    %357 = vst [vmem:[#allocation3 + $0x8] sm:$0xff] %v355
    %v358 = vld [vmem:[#allocation4] sm:$0xff]
    %v359 = vld [vmem:[#allocation4 + $0x8] sm:$0xff]
    %v360 = vld [vmem:[#allocation10] sm:$0xf]
    %v361 = vld [vmem:[#allocation10 + $0x4] sm:$0xf]
    %v362 = vld [vmem:[#allocation14] sm:$0xf]
    %v363 = vld [vmem:[#allocation14 + $0x4] sm:$0xf]
    %v364 = vld [vmem:[#allocation14 + $0x8] sm:$0xf]
    %v365 = vld [vmem:[#allocation14 + $0xc] sm:$0xf]
    %v366 = vld [vmem:[#allocation14 + $0x10] sm:$0xf]
    %v367 = vld [vmem:[#allocation14 + $0x14] sm:$0xf]
    %v368 = vld [vmem:[#allocation14 + $0x18] sm:$0xf]
    %v369 = vld [vmem:[#allocation14 + $0x1c] sm:$0xf]
    %v370 = vld [vmem:[#allocation14 + $0x20] sm:$0xf]
    %v371 = vld [vmem:[#allocation14 + $0x24] sm:$0xf]
    %v372 = vld [vmem:[#allocation14 + $0x28] sm:$0xf]
    %v373 = vld [vmem:[#allocation14 + $0x2c] sm:$0xf]
    %v374 = vld [vmem:[#allocation14 + $0x30] sm:$0xf]
    %v375 = vld [vmem:[#allocation14 + $0x34] sm:$0xf]
    %v376 = vld [vmem:[#allocation14 + $0x38] sm:$0xf]
    %v377 = vld [vmem:[#allocation14 + $0x3c] sm:$0xf]
    %v380 = vunpack.c.l.b16 %v360
    %v381 = vunpack.c.l.b16 %v361
    %v382 = vpack.c.b16 %v381, %v380
    %v400 = vunpack.c.l.b16 %v362
    %v401 = vunpack.c.l.b16 %v363
    %v402 = vunpack.c.l.b16 %v364
    %v403 = vunpack.c.l.b16 %v365
    %v404 = vunpack.c.l.b16 %v366
    %v405 = vunpack.c.l.b16 %v367
    %v406 = vunpack.c.l.b16 %v368
    %v407 = vunpack.c.l.b16 %v369
    %v408 = vunpack.c.l.b16 %v370
    %v409 = vunpack.c.l.b16 %v371
    %v410 = vunpack.c.l.b16 %v372
    %v411 = vunpack.c.l.b16 %v373
    %v412 = vunpack.c.l.b16 %v374
    %v413 = vunpack.c.l.b16 %v375
    %v414 = vunpack.c.l.b16 %v376
    %v415 = vunpack.c.l.b16 %v377
    %v416 = vpack.c.b16 %v401, %v400
    %v417 = vpack.c.b16 %v403, %v402
    %v418 = vpack.c.b16 %v405, %v404
    %v419 = vpack.c.b16 %v407, %v406
    %v420 = vpack.c.b16 %v409, %v408
    %v421 = vpack.c.b16 %v411, %v410
    %v422 = vpack.c.b16 %v413, %v412
    %v423 = vpack.c.b16 %v415, %v414
    %432 = vmatprep.subr.bf16.mxu0 0
    %433 = vmatpush1.bf16.msra.mxu0 %v416
    %434 = vmatprep.subr.bf16.mxu0 0
    %435 = vmatpush1.bf16.msra.mxu0 %v417
    %436 = vmatprep.subr.bf16.mxu0 0
    %437 = vmatpush1.bf16.msra.mxu0 %v418
    %438 = vmatprep.subr.bf16.mxu0 0
    %439 = vmatpush1.bf16.msra.mxu0 %v419
    %440 = vmatprep.subr.bf16.mxu0 0
    %441 = vmatpush1.bf16.msra.mxu0 %v420
    %442 = vmatprep.subr.bf16.mxu0 0
    %443 = vmatpush1.bf16.msra.mxu0 %v421
    %444 = vmatprep.subr.bf16.mxu0 0
    %445 = vmatpush1.bf16.msra.mxu0 %v422
    %446 = vmatprep.subr.bf16.mxu0 0
    %447 = vmatpush1.bf16.msra.mxu0 %v423
    %448 = vmatprep.subr.bf16.mxu0 0
    %449 = vmatpush1.bf16.msra.mxu0 0
    %450 = vmatprep.subr.bf16.mxu0 0
    %451 = vmatpush1.bf16.msra.mxu0 0
    %452 = vmatprep.subr.bf16.mxu0 0
    %453 = vmatpush1.bf16.msra.mxu0 0
    %454 = vmatprep.subr.bf16.mxu0 0
    %455 = vmatpush1.bf16.msra.mxu0 0
    %456 = vmatprep.subr.bf16.mxu0 0
    %457 = vmatpush1.bf16.msra.mxu0 0
    %458 = vmatprep.subr.bf16.mxu0 0
    %459 = vmatpush1.bf16.msra.mxu0 0
    %460 = vmatprep.subr.bf16.mxu0 0
    %461 = vmatpush1.bf16.msra.mxu0 0
    %462 = vmatprep.subr.bf16.mxu0 0
    %463 = vmatpush1.bf16.msra.mxu0 0
    %464 = vmatprep.mubr.bf16.mxu0 0
    %465 = vmatmul.mubr.bf16.gmra.mrb[0].mxu0 %v382
    %v466 = vpop.f32.mrb[0].mxu0
    %v467 = vadd.f32 0.0, %v466
    %v468 = vpop.f32.mrb[0].mxu0
    %v469 = vpop.f32.mrb[0].mxu0
    %v470 = vadd.f32 0.0, %v469
    %v471 = vpop.f32.mrb[0].mxu0
    %472 = vdwg.mxu0
    %v473 = vadd.f32 %v358, %v467
    %v474 = vadd.f32 %v359, %v470
    %475 = vst [vmem:[#allocation4] sm:$0xff] %v473
    %476 = vst [vmem:[#allocation4 + $0x8] sm:$0xff] %v474
    // Predicated region
    $region58: #{tpu_custom_call.1} parent=1 // pred_check
      %p477 = pneg %p110
    $region59: #{tpu_custom_call.1} parent=1 // pred_check_branch
      %479 = sbr.rel (%p477) target = $region61
    $region60: #{tpu_custom_call.1} parent=1 // pred_region
      %v480 = vld [vmem:[#allocation2] sm:$0xff]
      %v481 = vld [vmem:[#allocation2 + $0x8] sm:$0xff]
      %v482 = vld [vmem:[%s6] sm:$0x1]
      %v483 = vlaneseq
      %v484 = vshrl.u32 %v483, 7
      %v485 = vsub.s32 0, %v484
      %v486 = vrot.slane %v482, %v485
      %v487 = vadd.f32 %v480, %v486
      %v488 = vadd.f32 %v481, %v486
      %v489 = vpack.c.bf16 %v488, %v487
      %v491 = vunpack.c.l.b16 %v489
      %v492 = vunpack.c.h.b16 %v489
      %v493 = vpack.c.b16 %v491, %v491
      %v494 = vpack.c.b16 %v492, %v492
      %497 = vst [vmem:[#allocation16] sm:$0xf] %v493
      %498 = vst [vmem:[#allocation16 + $0x4] sm:$0xf] %v494
      %v499 = vld [vmem:[#allocation3] sm:$0xff]
      %v500 = vld [vmem:[#allocation3 + $0x8] sm:$0xff]
      %v501 = vld [vmem:[%s6 + $0x1] sm:$0x1]
      %v502 = vlaneseq
      %v503 = vshrl.u32 %v502, 7
      %v504 = vsub.s32 0, %v503
      %v505 = vrot.slane %v501, %v504
      %v506 = vadd.f32 %v499, %v505
      %v507 = vadd.f32 %v500, %v505
      %v508 = vpack.c.bf16 %v507, %v506
      %v510 = vunpack.c.l.b16 %v508
      %v511 = vunpack.c.h.b16 %v508
      %v512 = vpack.c.b16 %v510, %v510
      %v513 = vpack.c.b16 %v511, %v511
      %s516 = scalar_lea.vmem [#allocation16], 8
      %517 = vst [vmem:[%s516] sm:$0xf] %v512
      %518 = vst [vmem:[%s516 + $0x4] sm:$0xf] %v513
      %v519 = vld [vmem:[#allocation4] sm:$0xff]
      %v520 = vld [vmem:[#allocation4 + $0x8] sm:$0xff]
      %v521 = vld [vmem:[%s6 + $0x2] sm:$0x1]
      %v522 = vlaneseq
      %v523 = vshrl.u32 %v522, 7
      %v524 = vsub.s32 0, %v523
      %v525 = vrot.slane %v521, %v524
      %v526 = vadd.f32 %v519, %v525
      %v527 = vadd.f32 %v520, %v525
      %v528 = vpack.c.bf16 %v527, %v526
      %v530 = vunpack.c.l.b16 %v528
      %v531 = vunpack.c.h.b16 %v528
      %v532 = vpack.c.b16 %v530, %v530
      %v533 = vpack.c.b16 %v531, %v531
      %s536 = scalar_lea.vmem [#allocation16], 16
      %537 = vst [vmem:[%s536] sm:$0xf] %v532
      %538 = vst [vmem:[%s536 + $0x4] sm:$0xf] %v533
    $region61: #{tpu_custom_call.1} parent=1 // pred_fallthru
      _
    // Predicated region
    $region62: #{tpu_custom_call.1} parent=1 // pred_check
      _
    $region63: #{tpu_custom_call.1} parent=1 // pred_check_branch
      %540 = sbr.rel (0) target = $region65
    $region64: #{tpu_custom_call.1} parent=1 // pred_region
      %s542 = ssub.s32 384, 384
      %543 = vsyncadd [#allocation7], %s542
      %s544 = sshll.u32 [#allocation16], 4
      %s545 = int_to_ptr.vmem [resolvable:$true] %s544
      %550 = dma.vmem_to_hbm [thread:$0]  %s545, 384, %s7, [#allocation7], 64, 64, 4
    $region65: #{tpu_custom_call.1} parent=1 // pred_fallthru
      _
    // Predicated region
    $region66: #{tpu_custom_call.1} parent=1 // pred_check
      _
    $region67: #{tpu_custom_call.1} parent=1 // pred_check_branch
      %552 = sbr.rel (0) target = $region69
    $region68: #{tpu_custom_call.1} parent=1 // pred_region
      %553 = dma.done [#allocation7], 384
    $region69: #{tpu_custom_call.1} parent=1 // pred_fallthru
      _
    %554 = vsyncpa [#allocation6], 1
    %555 = vsyncpa [#allocation9], 1
    %556 = vsyncpa [#allocation12], 1
    %557 = vsyncpa [#allocation15], 1
    %558 = vsyncpa [#allocation7], 1

</llo_original>
